<compile_context>
chip_gen: v6e
topology: v6e:2x2x1
jax: 0.10.0
libtpu: 0.0.40
codegen_flags: <defaults>
</compile_context>

<pallas_src>
import jax
import jax.numpy as jnp
from jax.experimental import pallas as pl
from jax.experimental.pallas import tpu as pltpu


def _copy_kernel(x_ref, o_ref):
    # Identical (tm, tl) tiles; the prefix-aligned slice means input and output
    # block indices coincide, so this is a straight lane-dense copy.
    o_ref[...] = x_ref[...]


def _slice_kernel(x_ref, o_ref):
    # Fallback path: x_ref is (tm, L), o_ref is (tm, Lout); static sub-slice.
    o_ref[...] = x_ref[:, : o_ref.shape[-1]]


def _pick_row_tile(m, sub, tl, itemsize, budget_bytes=6 * 1024 * 1024):
    # Double-buffered in + out tiles ~= 4 * tm * tl * itemsize bytes.
    cap = max(sub, budget_bytes // (4 * tl * itemsize))
    if m <= cap:
        return m                          # full extent: always a legal block dim
    return max(sub, (cap // sub) * sub)   # multiple of the packed sublane count


def chomp1d(x, chomp_size):
    """x: (N, C, L). Returns x[:, :, :L - chomp_size] as a fresh (contiguous) array."""
    n, c, l = x.shape
    assert 0 < chomp_size < l, "chomp_size must be in (0, L)"
    lout = l - chomp_size

    m = n * c
    x2 = x.reshape(m, l)                  # L already innermost; reshape is free

    itemsize = jnp.dtype(x.dtype).itemsize
    sub = 8 * max(1, 4 // itemsize)       # sublane multiple: 8 f32, 16 bf16, 32 i8
    cost = pl.CostEstimate(flops=0, transcendentals=0,
                           bytes_accessed=2 * m * lout * itemsize)

    if lout >= 128:
        # Lane tile: multiple of 128, <= lout so blocks never exceed the arrays.
        tl = min(1024, (lout // 128) * 128)
        tm = _pick_row_tile(m, sub, tl, itemsize)
        grid = (pl.cdiv(m, tm), pl.cdiv(lout, tl))
        out2 = pl.pallas_call(
            _copy_kernel,
            out_shape=jax.ShapeDtypeStruct((m, lout), x.dtype),
            grid=grid,
            in_specs=[pl.BlockSpec((tm, tl), lambda i, j: (i, j))],
            out_specs=pl.BlockSpec((tm, tl), lambda i, j: (i, j)),
            compiler_params=pltpu.CompilerParams(
                dimension_semantics=("parallel", "parallel")),
            cost_estimate=cost,
        )(x2)
    else:
        # Short sequences: full-row blocks (last block dim == full array dim).
        tm = _pick_row_tile(m, sub, max(l, 128), itemsize)
        grid = (pl.cdiv(m, tm),)
        out2 = pl.pallas_call(
            _slice_kernel,
            out_shape=jax.ShapeDtypeStruct((m, lout), x.dtype),
            grid=grid,
            in_specs=[pl.BlockSpec((tm, l), lambda i: (i, 0))],
            out_specs=pl.BlockSpec((tm, lout), lambda i: (i, 0)),
            compiler_params=pltpu.CompilerParams(
                dimension_semantics=("parallel",)),
            cost_estimate=cost,
        )(x2)

    return out2.reshape(n, c, lout)


if __name__ == "__main__":
    key = jax.random.PRNGKey(0)

    # Case 1: module-scale shapes (exercises the short-sequence fallback path).
    N, C, L, CHOMP = 2, 4, 16, 4
    x = jax.random.normal(key, (N, C, L), jnp.float32)
    out = jax.block_until_ready(chomp1d(x, CHOMP))
    ref = x[:, :, :-CHOMP]
    assert out.shape == ref.shape, (out.shape, ref.shape)
    assert jnp.array_equal(out, ref), float(jnp.max(jnp.abs(out - ref)))

    # Case 2: longer sequence (exercises the 2-D tiled path incl. partial edge tile).
    N2, C2, L2, CHOMP2 = 2, 4, 320, 30     # Lout = 290 -> tl = 256, 2 lane tiles
    x2 = jax.random.normal(jax.random.PRNGKey(1), (N2, C2, L2), jnp.float32)
    out2 = jax.block_until_ready(chomp1d(x2, CHOMP2))
    ref2 = x2[:, :, :-CHOMP2]
    assert out2.shape == ref2.shape, (out2.shape, ref2.shape)
    assert jnp.array_equal(out2, ref2), float(jnp.max(jnp.abs(out2 - ref2)))

    print("KERNEL_OK")
</pallas_src>

<mosaic_0001>
module attributes {stable_mosaic.version = 11 : i64} {
  func.func @_slice_kernel(%arg0: i32, %arg1: memref<8x16xf32, #tpu.memory_space<vmem>>, %arg2: memref<8x12xf32, #tpu.memory_space<vmem>>) attributes {dimension_semantics = [#tpu.dimension_semantics<parallel>], iteration_bounds = array<i64: 1>, scalar_prefetch = 0 : i64, scratch_operands = 0 : i64, tpu.core_type = #tpu.core_type<tc>, window_params = [{transform_indices = @transform_0, window_bounds = array<i64: 8, 16>}, {transform_indices = @transform_1, window_bounds = array<i64: 8, 12>}]} {
    %c0 = arith.constant 0 : index
    %c0_0 = arith.constant 0 : index
    %0 = vector.load %arg1[%c0, %c0_0] : memref<8x16xf32, #tpu.memory_space<vmem>>, vector<8x12xf32>
    %c0_1 = arith.constant 0 : index
    %c0_2 = arith.constant 0 : index
    %1 = vector.load %arg2[%c0_1, %c0_2] : memref<8x12xf32, #tpu.memory_space<vmem>>, vector<8x12xf32>
    tpu.vector_store %arg2[%c0_1, %c0_2], %0 {strides = array<i32>} : memref<8x12xf32, #tpu.memory_space<vmem>>, vector<8x12xf32>,
    return
  }
  func.func @transform_0(%arg0: i32) -> (i32, i32) {
    %c0_i32 = arith.constant 0 : i32
    %c0_i32_0 = arith.constant 0 : i32
    return %arg0, %c0_i32 : i32, i32
  }
  func.func @transform_1(%arg0: i32) -> (i32, i32) {
    %c0_i32 = arith.constant 0 : i32
    %c0_i32_0 = arith.constant 0 : i32
    return %arg0, %c0_i32 : i32, i32
  }
}

</mosaic_0001>

<llo_original>
// kernel: tpu_custom_call.1
$region0: #{tpu_custom_call.1}
  #allocation0 [shape = 'u32[]', space=smem, size = 0x4, offset = 0x4, fixed_abs, tag = 'smem constant byte address 0x4 - core index']
  #allocation1 [shape = 'u32[144,128]{1,0:T(1,128)}', space=vmem, size = 0x12000, scoped, tag = 'internal scratch']
  %s0 = inlined_call_operand.hbm [shape: f32[8,16], index: 0, kind: input, shape index: {}]
  %s1 = inlined_call_operand.hbm [shape: f32[8,12], index: 1, kind: output, shape index: {}]
  %s2 = sld [smem:[#allocation0]]
  $region18: #{tpu_custom_call.1} parent=0
    _
  %s4 = ssub.s32 1, %s2
  %s5 = scalar_select 0, %s4, %s2
  $region1: #{tpu_custom_call.1} parent=0
    #allocation2 [shape = 'u8[4096]{0}', space=vmem, size = 0x1000, scoped, tag = 'input window, operand 0, single buffered']
    #allocation3 [shape = 's32[1]{0}', space=sflag, size = 0x4, scoped, tag = 'scoped memory for tpu_custom_call.1']
    #allocation4 [shape = 's32[1]{0}', space=sflag, size = 0x4, scoped, tag = 'scoped memory for tpu_custom_call.1']
    #allocation5 [shape = 'u8[4096]{0}', space=vmem, size = 0x1000, scoped, tag = 'output window, operand 0, single buffered']
    %6 = vsyncpa [#allocation3], 0
    %7 = vsyncpa [#allocation4], 0
    // Predicated region
    $region2: #{tpu_custom_call.1} parent=1 // pred_check
      _
    $region3: #{tpu_custom_call.1} parent=1 // pred_check_branch
      %9 = sbr.rel (0) target = $region5
    $region4: #{tpu_custom_call.1} parent=1 // pred_region
      %s11 = ssub.s32 128, 128
      %12 = vsyncadd [#allocation3], %s11
      %s14 = sshll.u32 [#allocation2], 4
      %s15 = int_to_ptr.vmem [resolvable:$true] %s14
      %17 = dma.hbm_to_vmem [thread:$0]  %s0, 128, %s15, [#allocation3]
    $region5: #{tpu_custom_call.1} parent=1 // pred_fallthru
      _
    // Predicated region
    $region6: #{tpu_custom_call.1} parent=1 // pred_check
      _
    $region7: #{tpu_custom_call.1} parent=1 // pred_check_branch
      %19 = sbr.rel (0) target = $region9
    $region8: #{tpu_custom_call.1} parent=1 // pred_region
      %20 = dma.done [#allocation3], 128
    $region9: #{tpu_custom_call.1} parent=1 // pred_fallthru
      _
    %v21 = vld [vmem:[#allocation2] sm:$0xff]
    %vm22 = vcmask 97280
    %23 = vst.msk [vmem:[#allocation5] sm:$0xff] %vm22, %v21
    // Predicated region
    $region10: #{tpu_custom_call.1} parent=1 // pred_check
      _
    $region11: #{tpu_custom_call.1} parent=1 // pred_check_branch
      %25 = sbr.rel (0) target = $region13
    $region12: #{tpu_custom_call.1} parent=1 // pred_region
      %s27 = ssub.s32 128, 128
      %28 = vsyncadd [#allocation4], %s27
      %s30 = sshll.u32 [#allocation5], 4
      %s31 = int_to_ptr.vmem [resolvable:$true] %s30
      %33 = dma.vmem_to_hbm [thread:$0]  %s31, 128, %s1, [#allocation4]
    $region13: #{tpu_custom_call.1} parent=1 // pred_fallthru
      _
    // Predicated region
    $region14: #{tpu_custom_call.1} parent=1 // pred_check
      _
    $region15: #{tpu_custom_call.1} parent=1 // pred_check_branch
      %35 = sbr.rel (0) target = $region17
    $region16: #{tpu_custom_call.1} parent=1 // pred_region
      %36 = dma.done [#allocation4], 128
    $region17: #{tpu_custom_call.1} parent=1 // pred_fallthru
      _
    %37 = vsyncpa [#allocation3], 1
    %38 = vsyncpa [#allocation4], 1

</llo_original>
